<compile_context>
chip_gen: v6e
topology: v6e:2x2x1
jax: 0.10.0
libtpu: 0.0.40
codegen_flags: <defaults>
</compile_context>

<pallas_src>
import math
from typing import NamedTuple

import jax
import jax.numpy as jnp
from jax import lax
from jax.experimental import pallas as pl
from jax.experimental.pallas import tpu as pltpu

NEG_SLOPE = 0.01  # torch.nn.LeakyReLU default


def _leaky(x):
    return jnp.where(x > 0, x, NEG_SLOPE * x)


def _round_up(x, m):
    return (x + m - 1) // m * m


class BlockMeta(NamedTuple):
    cin: int
    cout: int
    k: int
    dilation: int
    has_proj: bool


class _BlockPlan(NamedTuple):
    cin_p: int       # padded in-channels (multiple of 8)
    cout_p: int      # padded out-channels (multiple of 8)
    k: int
    d: int
    has_proj: bool
    w1_row: int      # row offsets into the packed weight/bias slabs
    w2_row: int
    wr_row: int


def _plan_blocks(meta):
    plans, row, max_cols = [], 0, 1
    for m in meta:
        cin_p = _round_up(m.cin, 8)
        cout_p = _round_up(m.cout, 8)
        w1_row = row; row += cout_p
        w2_row = row; row += cout_p
        wr_row = -1
        if m.has_proj:
            wr_row = row; row += cout_p
        max_cols = max(max_cols, m.k * cin_p, m.k * cout_p)
        plans.append(_BlockPlan(cin_p, cout_p, m.k, m.dilation, m.has_proj,
                                w1_row, w2_row, wr_row))
    return plans, row, _round_up(max_cols, 128)


# ---------------------------------------------------------------------------
# Fused Pallas kernel: the whole CausalCNN for one batch tile per grid step
# ---------------------------------------------------------------------------
def _make_kernel(plans, L, pad_max, seg, b_tile, compute_dtype):
    W = b_tile * seg   # lane width of every activation / RHS / store

    def kernel(x_ref, w_ref, b_ref, o_ref):
        # Per-segment validity mask (1 on the L real columns of each element,
        # 0 on the causal-pad prefix and right padding).  (1, W) f32, built
        # once per grid step, broadcasts over channel sublanes.
        pos = lax.broadcasted_iota(jnp.int32, (1, W), 1)
        mask = jnp.zeros((1, W), jnp.float32)
        for b in range(b_tile):
            lo = b * seg + pad_max
            mask = mask + ((pos >= lo) & (pos < lo + L)).astype(jnp.float32)

        def conv(h_m, cin_p, cout_p, row0, k, d):
            # h_m: masked f32 activation (cin_p, W); each element's pad prefix
            # is zero, so a dilated causal tap is a uniform lane shift by
            # (k-1-t)*d <= pad_max (XLU roll, no scratch staging).  The K taps
            # are folded into one K*cin_p-deep MXU contraction.
            taps = []
            for t in range(k):
                s = (k - 1 - t) * d
                taps.append(h_m if s == 0 else pltpu.roll(h_m, shift=s, axis=1))
            xf = taps[0] if k == 1 else jnp.concatenate(taps, axis=0)
            w = w_ref[row0:row0 + cout_p, 0:k * cin_p]        # compute_dtype
            # One cast per conv (no-op for f32); rolls/concat stay f32.
            y = jnp.dot(w, xf.astype(compute_dtype),
                        preferred_element_type=jnp.float32)
            return y + b_ref[row0:row0 + cout_p, 0:1]          # bias bcast

        cur = x_ref[...].astype(jnp.float32)                   # (cin0_p, W)
        for bp in plans:
            cur_m = cur * mask                                  # zero pad cols
            h1 = _leaky(conv(cur_m, bp.cin_p, bp.cout_p, bp.w1_row,
                             bp.k, bp.d))
            h2 = _leaky(conv(h1 * mask, bp.cout_p, bp.cout_p, bp.w2_row,
                             bp.k, bp.d))
            if bp.has_proj:
                res = conv(cur_m, bp.cin_p, bp.cout_p, bp.wr_row, 1, 1)
            else:
                res = cur
            cur = h2 + res                                      # no final act

        o_ref[...] = cur.astype(o_ref.dtype)                    # lane-dense vst

    return kernel


def build_causal_cnn_forward(meta, L, compute_dtype=jnp.float32, b_tile=None):
    """Returns a jitted forward: (x (B, Cin, L) f32, params) -> (B, Cout, L)."""
    meta = tuple(meta)
    plans, n_rows, slab_cols = _plan_blocks(meta)
    pad_max = max((m.k - 1) * m.dilation for m in meta)
    cin0, cout_last = meta[0].cin, meta[-1].cout
    cin0_p, cout_last_p = plans[0].cin_p, plans[-1].cout_p

    def fold_params(params):
        # Two contiguous operand slabs: weights (compute dtype) + biases (f32),
        # one row-group per conv at static offsets (rows are multiples of 8).
        w_slab = jnp.zeros((n_rows, slab_cols), compute_dtype)
        b_slab = jnp.zeros((n_rows, 1), jnp.float32)

        def put(ws, bs, row, w_oik, bias, cin_p, cout_p):
            cout, cin, k = w_oik.shape
            wf = jnp.transpose(w_oik, (0, 2, 1))                 # (cout,k,cin)
            wf = jnp.pad(wf, ((0, cout_p - cout), (0, 0), (0, cin_p - cin)))
            wf = wf.reshape(cout_p, k * cin_p).astype(compute_dtype)
            ws = ws.at[row:row + cout_p, 0:k * cin_p].set(wf)
            bs = bs.at[row:row + cout_p, 0].set(
                jnp.pad(bias, (0, cout_p - cout)).astype(jnp.float32))
            return ws, bs

        for bp, p in zip(plans, params):
            w_slab, b_slab = put(w_slab, b_slab, bp.w1_row, p["w1"], p["b1"],
                                 bp.cin_p, bp.cout_p)
            w_slab, b_slab = put(w_slab, b_slab, bp.w2_row, p["w2"], p["b2"],
                                 bp.cout_p, bp.cout_p)
            if bp.has_proj:
                w_slab, b_slab = put(w_slab, b_slab, bp.wr_row, p["wres"],
                                     p["bres"], bp.cin_p, bp.cout_p)
        return w_slab, b_slab

    @jax.jit
    def forward(x, params):
        B, cin, Lx = x.shape
        assert cin == cin0 and Lx == L, (x.shape, cin0, L)

        # Batch-tile / lane-width plan (all static under jit).
        seg_min = pad_max + L
        bt = b_tile if b_tile is not None else min(B, max(1, pl.cdiv(512, seg_min)))
        seg = _round_up(seg_min, 128 // math.gcd(bt, 128))   # bt*seg % 128 == 0
        n_tiles = pl.cdiv(B, bt)
        b_pad = n_tiles * bt
        W = bt * seg

        w_slab, b_slab = fold_params(params)

        # (B, Cin, L) -> lane-dense padded layout (Cin_p, B_pad*seg): each
        # element's segment is [pad_max zeros | L data | right-pad zeros].
        xp = x
        if b_pad > B:
            xp = jnp.pad(xp, ((0, b_pad - B), (0, 0), (0, 0)))
        xp = jnp.pad(xp, ((0, 0), (0, cin0_p - cin0),
                          (pad_max, seg - pad_max - L)))
        x_wide = jnp.transpose(xp, (1, 0, 2)).reshape(cin0_p, b_pad * seg)

        kernel = _make_kernel(plans, L, pad_max, seg, bt, compute_dtype)

        flops_tile = 0
        for bp in plans:
            flops_tile += 2 * W * (bp.k * bp.cin_p * bp.cout_p
                                   + bp.k * bp.cout_p * bp.cout_p
                                   + (bp.cin_p * bp.cout_p if bp.has_proj else 0))
        w_itemsize = jnp.dtype(compute_dtype).itemsize
        in_bytes = cin0_p * b_pad * seg * 4
        out_bytes = cout_last_p * b_pad * seg * 4
        slab_bytes = n_rows * slab_cols * w_itemsize + n_rows * 4

        # VMEM: double-buffered in/out blocks + resident slabs + live f32
        # intermediates (folded taps dominate), with ~2x headroom.
        k_max = max(bp.k for bp in plans)
        c_max = max(max(bp.cin_p, bp.cout_p) for bp in plans)
        live = 6 * k_max * c_max * W * 4
        vmem = 4 * (cin0_p + cout_last_p) * W * 4 \
            + (n_rows * _round_up(slab_cols, 128) * w_itemsize
               + n_rows * 128 * 4) + 2 * live
        vmem_limit = int(min(64 << 20, max(vmem + (8 << 20), 24 << 20)))

        y_wide = pl.pallas_call(
            kernel,
            out_shape=jax.ShapeDtypeStruct((cout_last_p, b_pad * seg),
                                           jnp.float32),
            grid=(n_tiles,),
            in_specs=[
                pl.BlockSpec((cin0_p, W), lambda i: (0, i)),
                pl.BlockSpec(w_slab.shape, lambda i: (0, 0)),   # resident slab
                pl.BlockSpec(b_slab.shape, lambda i: (0, 0)),   # resident slab
            ],
            out_specs=pl.BlockSpec((cout_last_p, W), lambda i: (0, i)),
            compiler_params=pltpu.CompilerParams(
                dimension_semantics=("parallel",),
                vmem_limit_bytes=vmem_limit),
            cost_estimate=pl.CostEstimate(
                flops=n_tiles * flops_tile,
                transcendentals=0,
                bytes_accessed=in_bytes + out_bytes + slab_bytes),
        )(x_wide, w_slab, b_slab)

        y = y_wide.reshape(cout_last_p, b_pad, seg)
        y = y[:cout_last, :B, pad_max:pad_max + L]
        return jnp.transpose(y, (1, 0, 2))                 # back to (B, Cout, L)

    return forward


# ---------------------------------------------------------------------------
# Deterministic parameter init (weight_norm folded into effective weights)
# ---------------------------------------------------------------------------
def _init_wn_conv(key, cin, cout, K):
    kv, kg, kb = jax.random.split(key, 3)
    v = jax.random.normal(kv, (cout, cin, K), jnp.float32) * 0.3
    g = jax.random.uniform(kg, (cout,), jnp.float32, minval=0.5, maxval=1.5)
    b = jax.random.normal(kb, (cout,), jnp.float32) * 0.1
    norm = jnp.sqrt(jnp.sum(v * v, axis=(1, 2), keepdims=True))
    w = g[:, None, None] * v / norm
    return w, b


def init_causal_cnn(key, in_channels, channels, depth, out_channels, K):
    meta, params = [], []
    dilation = 1
    dims = [(in_channels if i == 0 else channels, channels) for i in range(depth)]
    dims.append((channels, out_channels))
    for (cin, cout) in dims:
        key, k1, k2, k3 = jax.random.split(key, 4)
        w1, b1 = _init_wn_conv(k1, cin, cout, K)
        w2, b2 = _init_wn_conv(k2, cout, cout, K)
        p = dict(w1=w1, b1=b1, w2=w2, b2=b2)
        has_proj = cin != cout
        if has_proj:
            kr1, kr2 = jax.random.split(k3)
            p["wres"] = jax.random.normal(kr1, (cout, cin, 1), jnp.float32) * 0.3
            p["bres"] = jax.random.normal(kr2, (cout,), jnp.float32) * 0.1
        params.append(p)
        meta.append(BlockMeta(cin, cout, K, dilation, has_proj))
        dilation *= 2
    return tuple(meta), params


# ---------------------------------------------------------------------------
# Pure-JAX reference (mirrors the PyTorch forward exactly, NCL layout)
# ---------------------------------------------------------------------------
def _conv1d_ref(x_bcl, w_oik, b, dilation):
    K = w_oik.shape[2]
    pad = (K - 1) * dilation
    y = lax.conv_general_dilated(
        x_bcl, w_oik, window_strides=(1,), padding=[(pad, 0)],
        rhs_dilation=(dilation,), dimension_numbers=("NCH", "OIH", "NCH"))
    return y + b[None, :, None]


def causal_cnn_ref(x_bcl, meta, params):
    x = x_bcl
    for m, p in zip(meta, params):
        h = _leaky(_conv1d_ref(x, p["w1"], p["b1"], m.dilation))
        h = _leaky(_conv1d_ref(h, p["w2"], p["b2"], m.dilation))
        res = _conv1d_ref(x, p["wres"], p["bres"], 1) if m.has_proj else x
        x = h + res
    return x


if __name__ == "__main__":
    key = jax.random.PRNGKey(0)
    kx, kp = jax.random.split(key)

    B, C_in, L = 2, 4, 16
    channels, depth, C_out, kernel_size = 8, 2, 16, 3

    x = jax.random.normal(kx, (B, C_in, L), jnp.float32)   # PyTorch (B, C, L)
    meta, params = init_causal_cnn(kp, C_in, channels, depth, C_out, kernel_size)

    y_ref = causal_cnn_ref(x, meta, params)

    # f32 path (default; exact — recommended on v5e at these channel counts)
    fwd = build_causal_cnn_forward(meta, L, compute_dtype=jnp.float32)
    y = jax.block_until_ready(fwd(x, params))
    assert y.shape == (B, C_out, L), y.shape
    assert jnp.allclose(y, y_ref, rtol=1e-3, atol=1e-3), (
        float(jnp.max(jnp.abs(y - y_ref))))

    # bf16 MXU inputs, f32 accumulation + f32 elementwise (looser tolerance)
    fwd_bf16 = build_causal_cnn_forward(meta, L, compute_dtype=jnp.bfloat16)
    y16 = jax.block_until_ready(fwd_bf16(x, params))
    assert jnp.allclose(y16, y_ref, rtol=1e-1, atol=1e-1), (
        float(jnp.max(jnp.abs(y16 - y_ref))))

    print("KERNEL_OK")
</pallas_src>

<mosaic_0001>
module attributes {stable_mosaic.version = 11 : i64} {
  func.func @kernel(%arg0: i32, %arg1: memref<8x128xf32, #tpu.memory_space<vmem>>, %arg2: memref<88x128xf32, #tpu.memory_space<vmem>>, %arg3: memref<88x1xf32, #tpu.memory_space<vmem>>, %arg4: memref<16x128xf32, #tpu.memory_space<vmem>>) attributes {dimension_semantics = [#tpu.dimension_semantics<parallel>], iteration_bounds = array<i64: 1>, scalar_prefetch = 0 : i64, scratch_operands = 0 : i64, tpu.core_type = #tpu.core_type<tc>, window_params = [{transform_indices = @transform_0, window_bounds = array<i64: 8, 128>}, {pipeline_mode = #tpu.pipeline_mode<synchronous>, transform_indices = @transform_1, window_bounds = array<i64: 88, 128>}, {pipeline_mode = #tpu.pipeline_mode<synchronous>, transform_indices = @transform_2, window_bounds = array<i64: 88, 1>}, {transform_indices = @transform_3, window_bounds = array<i64: 16, 128>}]} {
    %0 = tpu.iota {dimensions = array<i32: 1>} : vector<1x128xi32>
    %cst = arith.constant 0.000000e+00 : f32
    %1 = vector.broadcast %cst : f32 to vector<1x128xf32>
    %c8_i32 = arith.constant 8 : i32
    %2 = vector.broadcast %c8_i32 : i32 to vector<1x128xi32>
    %3 = arith.cmpi sge, %0, %2 : vector<1x128xi32>
    %c24_i32 = arith.constant 24 : i32
    %4 = vector.broadcast %c24_i32 : i32 to vector<1x128xi32>
    %5 = arith.cmpi slt, %0, %4 : vector<1x128xi32>
    %6 = arith.andi %3, %5 : vector<1x128xi1>
    %7 = arith.extui %6 : vector<1x128xi1> to vector<1x128xi32>
    %8 = arith.sitofp %7 : vector<1x128xi32> to vector<1x128xf32>
    %9 = arith.addf %1, %8 : vector<1x128xf32>
    %c72_i32 = arith.constant 72 : i32
    %10 = vector.broadcast %c72_i32 : i32 to vector<1x128xi32>
    %11 = arith.cmpi sge, %0, %10 : vector<1x128xi32>
    %c88_i32 = arith.constant 88 : i32
    %12 = vector.broadcast %c88_i32 : i32 to vector<1x128xi32>
    %13 = arith.cmpi slt, %0, %12 : vector<1x128xi32>
    %14 = arith.andi %11, %13 : vector<1x128xi1>
    %15 = arith.extui %14 : vector<1x128xi1> to vector<1x128xi32>
    %16 = arith.sitofp %15 : vector<1x128xi32> to vector<1x128xf32>
    %17 = arith.addf %9, %16 : vector<1x128xf32>
    %c0 = arith.constant 0 : index
    %c0_0 = arith.constant 0 : index
    %18 = vector.load %arg1[%c0, %c0_0] : memref<8x128xf32, #tpu.memory_space<vmem>>, vector<8x128xf32>
    %19 = vector.broadcast %17 : vector<1x128xf32> to vector<8x128xf32>
    %20 = arith.mulf %18, %19 : vector<8x128xf32>
    %c2_i32 = arith.constant 2 : i32
    %21 = tpu.dynamic_rotate %20 by %c2_i32 dim 1 : vector<8x128xf32>, i32 -> vector<8x128xf32>
    %c1_i32 = arith.constant 1 : i32
    %22 = tpu.dynamic_rotate %20 by %c1_i32 dim 1 : vector<8x128xf32>, i32 -> vector<8x128xf32>
    %23 = tpu.concatenate %21, %22, %20 in 0 : vector<8x128xf32>, vector<8x128xf32>, vector<8x128xf32> -> vector<24x128xf32>
    %c0_1 = arith.constant 0 : index
    %c0_2 = arith.constant 0 : index
    %24 = vector.load %arg2[%c0_1, %c0_2] : memref<88x128xf32, #tpu.memory_space<vmem>>, vector<8x24xf32>
    %cst_3 = arith.constant dense<0.000000e+00> : vector<8x128xf32>
    %25 = tpu.matmul %24, %23, %cst_3 {dimension_numbers = #tpu.dot_dimension_numbers<[1], [0], [0], [1], [0, 0, 1, 1], [], []>} : vector<8x24xf32>, vector<24x128xf32>, vector<8x128xf32> -> vector<8x128xf32>
    %c0_4 = arith.constant 0 : index
    %c0_5 = arith.constant 0 : index
    %26 = vector.load %arg3[%c0_4, %c0_5] : memref<88x1xf32, #tpu.memory_space<vmem>>, vector<8x1xf32>
    %27 = vector.broadcast %26 : vector<8x1xf32> to vector<8x128xf32>
    %28 = arith.addf %25, %27 : vector<8x128xf32>
    %cst_6 = arith.constant 0.000000e+00 : f32
    %29 = vector.broadcast %cst_6 : f32 to vector<8x128xf32>
    %30 = arith.cmpf ogt, %28, %29 : vector<8x128xf32>
    %cst_7 = arith.constant 0.00999999977 : f32
    %31 = vector.broadcast %cst_7 : f32 to vector<8x128xf32>
    %32 = arith.mulf %31, %28 : vector<8x128xf32>
    %33 = arith.select %30, %28, %32 : vector<8x128xi1>, vector<8x128xf32>
    %34 = vector.broadcast %17 : vector<1x128xf32> to vector<8x128xf32>
    %35 = arith.mulf %33, %34 : vector<8x128xf32>
    %c2_i32_8 = arith.constant 2 : i32
    %36 = tpu.dynamic_rotate %35 by %c2_i32_8 dim 1 : vector<8x128xf32>, i32 -> vector<8x128xf32>
    %c1_i32_9 = arith.constant 1 : i32
    %37 = tpu.dynamic_rotate %35 by %c1_i32_9 dim 1 : vector<8x128xf32>, i32 -> vector<8x128xf32>
    %38 = tpu.concatenate %36, %37, %35 in 0 : vector<8x128xf32>, vector<8x128xf32>, vector<8x128xf32> -> vector<24x128xf32>
    %c8 = arith.constant 8 : index
    %c0_10 = arith.constant 0 : index
    %39 = vector.load %arg2[%c8, %c0_10] : memref<88x128xf32, #tpu.memory_space<vmem>>, vector<8x24xf32>
    %cst_11 = arith.constant dense<0.000000e+00> : vector<8x128xf32>
    %40 = tpu.matmul %39, %38, %cst_11 {dimension_numbers = #tpu.dot_dimension_numbers<[1], [0], [0], [1], [0, 0, 1, 1], [], []>} : vector<8x24xf32>, vector<24x128xf32>, vector<8x128xf32> -> vector<8x128xf32>
    %c8_12 = arith.constant 8 : index
    %c0_13 = arith.constant 0 : index
    %41 = vector.load %arg3[%c8_12, %c0_13] : memref<88x1xf32, #tpu.memory_space<vmem>>, vector<8x1xf32>
    %42 = vector.broadcast %41 : vector<8x1xf32> to vector<8x128xf32>
    %43 = arith.addf %40, %42 : vector<8x128xf32>
    %cst_14 = arith.constant 0.000000e+00 : f32
    %44 = vector.broadcast %cst_14 : f32 to vector<8x128xf32>
    %45 = arith.cmpf ogt, %43, %44 : vector<8x128xf32>
    %cst_15 = arith.constant 0.00999999977 : f32
    %46 = vector.broadcast %cst_15 : f32 to vector<8x128xf32>
    %47 = arith.mulf %46, %43 : vector<8x128xf32>
    %48 = arith.select %45, %43, %47 : vector<8x128xi1>, vector<8x128xf32>
    %c16 = arith.constant 16 : index
    %c0_16 = arith.constant 0 : index
    %49 = vector.load %arg2[%c16, %c0_16] : memref<88x128xf32, #tpu.memory_space<vmem>>, vector<8x8xf32>
    %cst_17 = arith.constant dense<0.000000e+00> : vector<8x128xf32>
    %50 = tpu.matmul %49, %20, %cst_17 {dimension_numbers = #tpu.dot_dimension_numbers<[1], [0], [0], [1], [0, 0, 1, 1], [], []>} : vector<8x8xf32>, vector<8x128xf32>, vector<8x128xf32> -> vector<8x128xf32>
    %c16_18 = arith.constant 16 : index
    %c0_19 = arith.constant 0 : index
    %51 = vector.load %arg3[%c16_18, %c0_19] : memref<88x1xf32, #tpu.memory_space<vmem>>, vector<8x1xf32>
    %52 = vector.broadcast %51 : vector<8x1xf32> to vector<8x128xf32>
    %53 = arith.addf %50, %52 : vector<8x128xf32>
    %54 = arith.addf %48, %53 : vector<8x128xf32>
    %55 = vector.broadcast %17 : vector<1x128xf32> to vector<8x128xf32>
    %56 = arith.mulf %54, %55 : vector<8x128xf32>
    %c4_i32 = arith.constant 4 : i32
    %57 = tpu.dynamic_rotate %56 by %c4_i32 dim 1 : vector<8x128xf32>, i32 -> vector<8x128xf32>
    %c2_i32_20 = arith.constant 2 : i32
    %58 = tpu.dynamic_rotate %56 by %c2_i32_20 dim 1 : vector<8x128xf32>, i32 -> vector<8x128xf32>
    %59 = tpu.concatenate %57, %58, %56 in 0 : vector<8x128xf32>, vector<8x128xf32>, vector<8x128xf32> -> vector<24x128xf32>
    %c24 = arith.constant 24 : index
    %c0_21 = arith.constant 0 : index
    %60 = vector.load %arg2[%c24, %c0_21] : memref<88x128xf32, #tpu.memory_space<vmem>>, vector<8x24xf32>
    %cst_22 = arith.constant dense<0.000000e+00> : vector<8x128xf32>
    %61 = tpu.matmul %60, %59, %cst_22 {dimension_numbers = #tpu.dot_dimension_numbers<[1], [0], [0], [1], [0, 0, 1, 1], [], []>} : vector<8x24xf32>, vector<24x128xf32>, vector<8x128xf32> -> vector<8x128xf32>
    %c24_23 = arith.constant 24 : index
    %c0_24 = arith.constant 0 : index
    %62 = vector.load %arg3[%c24_23, %c0_24] : memref<88x1xf32, #tpu.memory_space<vmem>>, vector<8x1xf32>
    %63 = vector.broadcast %62 : vector<8x1xf32> to vector<8x128xf32>
    %64 = arith.addf %61, %63 : vector<8x128xf32>
    %cst_25 = arith.constant 0.000000e+00 : f32
    %65 = vector.broadcast %cst_25 : f32 to vector<8x128xf32>
    %66 = arith.cmpf ogt, %64, %65 : vector<8x128xf32>
    %cst_26 = arith.constant 0.00999999977 : f32
    %67 = vector.broadcast %cst_26 : f32 to vector<8x128xf32>
    %68 = arith.mulf %67, %64 : vector<8x128xf32>
    %69 = arith.select %66, %64, %68 : vector<8x128xi1>, vector<8x128xf32>
    %70 = vector.broadcast %17 : vector<1x128xf32> to vector<8x128xf32>
    %71 = arith.mulf %69, %70 : vector<8x128xf32>
    %c4_i32_27 = arith.constant 4 : i32
    %72 = tpu.dynamic_rotate %71 by %c4_i32_27 dim 1 : vector<8x128xf32>, i32 -> vector<8x128xf32>
    %c2_i32_28 = arith.constant 2 : i32
    %73 = tpu.dynamic_rotate %71 by %c2_i32_28 dim 1 : vector<8x128xf32>, i32 -> vector<8x128xf32>
    %74 = tpu.concatenate %72, %73, %71 in 0 : vector<8x128xf32>, vector<8x128xf32>, vector<8x128xf32> -> vector<24x128xf32>
    %c32 = arith.constant 32 : index
    %c0_29 = arith.constant 0 : index
    %75 = vector.load %arg2[%c32, %c0_29] : memref<88x128xf32, #tpu.memory_space<vmem>>, vector<8x24xf32>
    %cst_30 = arith.constant dense<0.000000e+00> : vector<8x128xf32>
    %76 = tpu.matmul %75, %74, %cst_30 {dimension_numbers = #tpu.dot_dimension_numbers<[1], [0], [0], [1], [0, 0, 1, 1], [], []>} : vector<8x24xf32>, vector<24x128xf32>, vector<8x128xf32> -> vector<8x128xf32>
    %c32_31 = arith.constant 32 : index
    %c0_32 = arith.constant 0 : index
    %77 = vector.load %arg3[%c32_31, %c0_32] : memref<88x1xf32, #tpu.memory_space<vmem>>, vector<8x1xf32>
    %78 = vector.broadcast %77 : vector<8x1xf32> to vector<8x128xf32>
    %79 = arith.addf %76, %78 : vector<8x128xf32>
    %cst_33 = arith.constant 0.000000e+00 : f32
    %80 = vector.broadcast %cst_33 : f32 to vector<8x128xf32>
    %81 = arith.cmpf ogt, %79, %80 : vector<8x128xf32>
    %cst_34 = arith.constant 0.00999999977 : f32
    %82 = vector.broadcast %cst_34 : f32 to vector<8x128xf32>
    %83 = arith.mulf %82, %79 : vector<8x128xf32>
    %84 = arith.select %81, %79, %83 : vector<8x128xi1>, vector<8x128xf32>
    %85 = arith.addf %84, %54 : vector<8x128xf32>
    %86 = vector.broadcast %17 : vector<1x128xf32> to vector<8x128xf32>
    %87 = arith.mulf %85, %86 : vector<8x128xf32>
    %c8_i32_35 = arith.constant 8 : i32
    %88 = tpu.dynamic_rotate %87 by %c8_i32_35 dim 1 : vector<8x128xf32>, i32 -> vector<8x128xf32>
    %c4_i32_36 = arith.constant 4 : i32
    %89 = tpu.dynamic_rotate %87 by %c4_i32_36 dim 1 : vector<8x128xf32>, i32 -> vector<8x128xf32>
    %90 = tpu.concatenate %88, %89, %87 in 0 : vector<8x128xf32>, vector<8x128xf32>, vector<8x128xf32> -> vector<24x128xf32>
    %c40 = arith.constant 40 : index
    %c0_37 = arith.constant 0 : index
    %91 = vector.load %arg2[%c40, %c0_37] : memref<88x128xf32, #tpu.memory_space<vmem>>, vector<16x24xf32>
    %cst_38 = arith.constant dense<0.000000e+00> : vector<16x128xf32>
    %92 = tpu.matmul %91, %90, %cst_38 {dimension_numbers = #tpu.dot_dimension_numbers<[1], [0], [0], [1], [0, 0, 1, 1], [], []>} : vector<16x24xf32>, vector<24x128xf32>, vector<16x128xf32> -> vector<16x128xf32>
    %c40_39 = arith.constant 40 : index
    %c0_40 = arith.constant 0 : index
    %93 = vector.load %arg3[%c40_39, %c0_40] : memref<88x1xf32, #tpu.memory_space<vmem>>, vector<16x1xf32>
    %94 = vector.broadcast %93 : vector<16x1xf32> to vector<16x128xf32>
    %95 = arith.addf %92, %94 : vector<16x128xf32>
    %cst_41 = arith.constant 0.000000e+00 : f32
    %96 = vector.broadcast %cst_41 : f32 to vector<16x128xf32>
    %97 = arith.cmpf ogt, %95, %96 : vector<16x128xf32>
    %cst_42 = arith.constant 0.00999999977 : f32
    %98 = vector.broadcast %cst_42 : f32 to vector<16x128xf32>
    %99 = arith.mulf %98, %95 : vector<16x128xf32>
    %100 = arith.select %97, %95, %99 : vector<16x128xi1>, vector<16x128xf32>
    %101 = vector.broadcast %17 : vector<1x128xf32> to vector<16x128xf32>
    %102 = arith.mulf %100, %101 : vector<16x128xf32>
    %c8_i32_43 = arith.constant 8 : i32
    %103 = tpu.dynamic_rotate %102 by %c8_i32_43 dim 1 : vector<16x128xf32>, i32 -> vector<16x128xf32>
    %c4_i32_44 = arith.constant 4 : i32
    %104 = tpu.dynamic_rotate %102 by %c4_i32_44 dim 1 : vector<16x128xf32>, i32 -> vector<16x128xf32>
    %105 = tpu.concatenate %103, %104, %102 in 0 : vector<16x128xf32>, vector<16x128xf32>, vector<16x128xf32> -> vector<48x128xf32>
    %c56 = arith.constant 56 : index
    %c0_45 = arith.constant 0 : index
    %106 = vector.load %arg2[%c56, %c0_45] : memref<88x128xf32, #tpu.memory_space<vmem>>, vector<16x48xf32>
    %cst_46 = arith.constant dense<0.000000e+00> : vector<16x128xf32>
    %107 = tpu.matmul %106, %105, %cst_46 {dimension_numbers = #tpu.dot_dimension_numbers<[1], [0], [0], [1], [0, 0, 1, 1], [], []>} : vector<16x48xf32>, vector<48x128xf32>, vector<16x128xf32> -> vector<16x128xf32>
    %c56_47 = arith.constant 56 : index
    %c0_48 = arith.constant 0 : index
    %108 = vector.load %arg3[%c56_47, %c0_48] : memref<88x1xf32, #tpu.memory_space<vmem>>, vector<16x1xf32>
    %109 = vector.broadcast %108 : vector<16x1xf32> to vector<16x128xf32>
    %110 = arith.addf %107, %109 : vector<16x128xf32>
    %cst_49 = arith.constant 0.000000e+00 : f32
    %111 = vector.broadcast %cst_49 : f32 to vector<16x128xf32>
    %112 = arith.cmpf ogt, %110, %111 : vector<16x128xf32>
    %cst_50 = arith.constant 0.00999999977 : f32
    %113 = vector.broadcast %cst_50 : f32 to vector<16x128xf32>
    %114 = arith.mulf %113, %110 : vector<16x128xf32>
    %115 = arith.select %112, %110, %114 : vector<16x128xi1>, vector<16x128xf32>
    %c72 = arith.constant 72 : index
    %c0_51 = arith.constant 0 : index
    %116 = vector.load %arg2[%c72, %c0_51] : memref<88x128xf32, #tpu.memory_space<vmem>>, vector<16x8xf32>
    %cst_52 = arith.constant dense<0.000000e+00> : vector<16x128xf32>
    %117 = tpu.matmul %116, %87, %cst_52 {dimension_numbers = #tpu.dot_dimension_numbers<[1], [0], [0], [1], [0, 0, 1, 1], [], []>} : vector<16x8xf32>, vector<8x128xf32>, vector<16x128xf32> -> vector<16x128xf32>
    %c72_53 = arith.constant 72 : index
    %c0_54 = arith.constant 0 : index
    %118 = vector.load %arg3[%c72_53, %c0_54] : memref<88x1xf32, #tpu.memory_space<vmem>>, vector<16x1xf32>
    %119 = vector.broadcast %118 : vector<16x1xf32> to vector<16x128xf32>
    %120 = arith.addf %117, %119 : vector<16x128xf32>
    %121 = arith.addf %115, %120 : vector<16x128xf32>
    %c0_55 = arith.constant 0 : index
    %c0_56 = arith.constant 0 : index
    %122 = vector.load %arg4[%c0_55, %c0_56] : memref<16x128xf32, #tpu.memory_space<vmem>>, vector<16x128xf32>
    tpu.vector_store %arg4[%c0_55, %c0_56], %121 {strides = array<i32>} : memref<16x128xf32, #tpu.memory_space<vmem>>, vector<16x128xf32>,
    return
  }
  func.func @transform_0(%arg0: i32) -> (i32, i32) {
    %c0_i32 = arith.constant 0 : i32
    %c0_i32_0 = arith.constant 0 : i32
    return %c0_i32, %arg0 : i32, i32
  }
  func.func @transform_1(%arg0: i32) -> (i32, i32) {
    %c0_i32 = arith.constant 0 : i32
    %c0_i32_0 = arith.constant 0 : i32
    %c0_i32_1 = arith.constant 0 : i32
    return %c0_i32, %c0_i32_0 : i32, i32
  }
  func.func @transform_2(%arg0: i32) -> (i32, i32) {
    %c0_i32 = arith.constant 0 : i32
    %c0_i32_0 = arith.constant 0 : i32
    %c0_i32_1 = arith.constant 0 : i32
    return %c0_i32, %c0_i32_0 : i32, i32
  }
  func.func @transform_3(%arg0: i32) -> (i32, i32) {
    %c0_i32 = arith.constant 0 : i32
    %c0_i32_0 = arith.constant 0 : i32
    return %c0_i32, %arg0 : i32, i32
  }
}

</mosaic_0001>

<llo_original>
// kernel: forward.1
$region0: #{forward.1}
  #allocation0 [shape = 'u32[]', space=smem, size = 0x4, offset = 0x4, fixed_abs, tag = 'smem constant byte address 0x4 - core index']
  #allocation1 [shape = 'u32[144,128]{1,0:T(1,128)}', space=vmem, size = 0x12000, scoped, tag = 'internal scratch']
  %s0 = inlined_call_operand.vmem [shape: f32[8,128], index: 0, kind: input, shape index: {}]
  %s1 = inlined_call_operand.vmem [shape: f32[88,128], index: 1, kind: input, shape index: {}]
  %s2 = inlined_call_operand.vmem [shape: f32[88,1], index: 2, kind: input, shape index: {}]
  %s3 = inlined_call_operand.vmem [shape: f32[16,128], index: 3, kind: output, shape index: {}]
  %s4 = sld [smem:[#allocation0]]
  $region22: #{forward.1} parent=0
    _
  %s6 = ssub.s32 1, %s4
  %s7 = scalar_select 0, %s6, %s4
  // Predicated region
  $region2: #{forward.1} parent=0 // pred_check
    _
  $region3: #{forward.1} parent=0 // pred_check_branch
    %9 = sbr.rel (0) target = $region5
  $region4: #{forward.1} parent=0 // pred_region
    _
  $region5: #{forward.1} parent=0 // pred_fallthru
    _
  // Predicated region
  $region6: #{forward.1} parent=0 // pred_check
    _
  $region7: #{forward.1} parent=0 // pred_check_branch
    %11 = sbr.rel (0) target = $region9
  $region8: #{forward.1} parent=0 // pred_region
    _
  $region9: #{forward.1} parent=0 // pred_fallthru
    _
  // Predicated region
  $region10: #{forward.1} parent=0 // pred_check
    _
  $region11: #{forward.1} parent=0 // pred_check_branch
    %13 = sbr.rel (0) target = $region13
  $region12: #{forward.1} parent=0 // pred_region
    _
  $region13: #{forward.1} parent=0 // pred_fallthru
    _
  %v14 = vlaneseq
  %v15 = vand.u32 %v14, 127
  %vm16 = vcmp.ge.s32.totalorder %v15, 8
  %vm17 = vcmp.lt.s32.totalorder %v15, 24
  %vm18 = vmand %vm16, %vm17
  %v19 = vsel %vm18, 1, 0
  %v20 = vcvt.s32.f32 %v19
  %v21 = vadd.f32 %v20, 0.0
  %vm22 = vcmp.ge.s32.totalorder %v15, 72
  %vm23 = vcmp.lt.s32.totalorder %v15, 88
  %vm24 = vmand %vm22, %vm23
  %v25 = vsel %vm24, 1, 0
  %v26 = vcvt.s32.f32 %v25
  %v27 = vadd.f32 %v21, %v26
  %v28 = vld [vmem:[%s0] sm:$0xff]
  %v29 = vmul.f32 %v28, %v27
  %30 = vrot.lane.b32.xlu0 %v29, 2
  %v31 = vpop.permute.xlu0 %30
  %32 = vrot.lane.b32.xlu0 %v29, 1
  %v33 = vpop.permute.xlu0 %32
  %v34 = vld [vmem:[%s1] sm:$0xff]
  %v35 = vld [vmem:[%s2] sm:$0xff]
  %37 = vset.pattern.permute.xlu0 0
  %38 = vperm.xlu0 %37, %v35
  %v39 = vpop.permute.xlu0 %38
  %vm41 = vcmask 195584
  %v43 = vsel %vm41, %v34, 0
  %45 = vmatprep.subr.mxu0 0.0
  %46 = vmatpush1.msra.mxu0 0.0
  %47 = vmatprep.subr.mxu0 0.0
  %48 = vmatpush1.msra.mxu0 0.0
  %49 = vmatprep.subr.mxu0 0.0
  %50 = vmatpush1.msra.mxu0 0.0
  %51 = vmatprep.subr.mxu0 0.0
  %52 = vmatpush1.msra.mxu0 0.0
  %53 = vmatprep.subr.mxu0 0.0
  %54 = vmatpush1.msra.mxu0 0.0
  %55 = vmatprep.subr.mxu0 0.0
  %56 = vmatpush1.msra.mxu0 0.0
  %57 = vmatprep.subr.mxu0 0.0
  %58 = vmatpush1.msra.mxu0 0.0
  %59 = vmatprep.subr.mxu0 0.0
  %60 = vmatpush1.msra.mxu0 0.0
  %61 = vmatprep.subr.mxu0 0.0
  %62 = vmatpush1.msra.mxu0 0.0
  %63 = vmatprep.subr.mxu0 0.0
  %64 = vmatpush1.msra.mxu0 0.0
  %65 = vmatprep.subr.mxu0 0.0
  %66 = vmatpush1.msra.mxu0 0.0
  %67 = vmatprep.subr.mxu0 0.0
  %68 = vmatpush1.msra.mxu0 0.0
  %69 = vmatprep.subr.mxu0 0.0
  %70 = vmatpush1.msra.mxu0 0.0
  %71 = vmatprep.subr.mxu0 0.0
  %72 = vmatpush1.msra.mxu0 %v29
  %73 = vmatprep.subr.mxu0 0.0
  %74 = vmatpush1.msra.mxu0 %v33
  %75 = vmatprep.subr.mxu0 0.0
  %76 = vmatpush1.msra.mxu0 %v31
  %77 = vmatprep.subr.mxu0 0.0
  %78 = vmatpush2.msra.mxu0 0.0
  %79 = vmatprep.subr.mxu0 0.0
  %80 = vmatpush2.msra.mxu0 0.0
  %81 = vmatprep.subr.mxu0 0.0
  %82 = vmatpush2.msra.mxu0 0.0
  %83 = vmatprep.subr.mxu0 0.0
  %84 = vmatpush2.msra.mxu0 0.0
  %85 = vmatprep.subr.mxu0 0.0
  %86 = vmatpush2.msra.mxu0 0.0
  %87 = vmatprep.subr.mxu0 0.0
  %88 = vmatpush2.msra.mxu0 0.0
  %89 = vmatprep.subr.mxu0 0.0
  %90 = vmatpush2.msra.mxu0 0.0
  %91 = vmatprep.subr.mxu0 0.0
  %92 = vmatpush2.msra.mxu0 0.0
  %93 = vmatprep.subr.mxu0 0.0
  %94 = vmatpush2.msra.mxu0 0.0
  %95 = vmatprep.subr.mxu0 0.0
  %96 = vmatpush2.msra.mxu0 0.0
  %97 = vmatprep.subr.mxu0 0.0
  %98 = vmatpush2.msra.mxu0 0.0
  %99 = vmatprep.subr.mxu0 0.0
  %100 = vmatpush2.msra.mxu0 0.0
  %101 = vmatprep.subr.mxu0 0.0
  %102 = vmatpush2.msra.mxu0 0.0
  %103 = vmatprep.subr.mxu0 0.0
  %104 = vmatpush2.msra.mxu0 0.0
  %105 = vmatprep.subr.mxu0 0.0
  %106 = vmatpush2.msra.mxu0 0.0
  %107 = vmatprep.subr.mxu0 0.0
  %108 = vmatpush2.msra.mxu0 0.0
  %109 = vmatprep.mubr.f32.mxu0 0.0
  %110 = vmatmul.mubr.f32.gmra.mxu0 %v43
  %v111 = vpop.f32.mrf.mxu0
  %v112 = vadd.f32 %v39, %v111
  %v113 = vpop.f32.mrf.mxu0
  %114 = vdwg.mxu0
  %vm115 = vcmp.gt.f32.partialorder %v112, 0.0
  %v116 = vmul.f32 %v112, 0.01
  %v117 = vsel %vm115, %v112, %v116
  %v118 = vmul.f32 %v117, %v27
  %119 = vrot.lane.b32.xlu0 %v118, 2
  %v120 = vpop.permute.xlu0 %119
  %121 = vrot.lane.b32.xlu0 %v118, 1
  %v122 = vpop.permute.xlu0 %121
  %v123 = vld [vmem:[%s1 + $0x8] sm:$0xff]
  %v124 = vld [vmem:[%s2 + $0x8] sm:$0xff]
  %126 = vset.pattern.permute.xlu0 0
  %127 = vperm.xlu0 %126, %v124
  %v128 = vpop.permute.xlu0 %127
  %v131 = vsel %vm41, %v123, 0
  %133 = vmatprep.subr.mxu0 0.0
  %134 = vmatpush1.msra.mxu0 0.0
  %135 = vmatprep.subr.mxu0 0.0
  %136 = vmatpush1.msra.mxu0 0.0
  %137 = vmatprep.subr.mxu0 0.0
  %138 = vmatpush1.msra.mxu0 0.0
  %139 = vmatprep.subr.mxu0 0.0
  %140 = vmatpush1.msra.mxu0 0.0
  %141 = vmatprep.subr.mxu0 0.0
  %142 = vmatpush1.msra.mxu0 0.0
  %143 = vmatprep.subr.mxu0 0.0
  %144 = vmatpush1.msra.mxu0 0.0
  %145 = vmatprep.subr.mxu0 0.0
  %146 = vmatpush1.msra.mxu0 0.0
  %147 = vmatprep.subr.mxu0 0.0
  %148 = vmatpush1.msra.mxu0 0.0
  %149 = vmatprep.subr.mxu0 0.0
  %150 = vmatpush1.msra.mxu0 0.0
  %151 = vmatprep.subr.mxu0 0.0
  %152 = vmatpush1.msra.mxu0 0.0
  %153 = vmatprep.subr.mxu0 0.0
  %154 = vmatpush1.msra.mxu0 0.0
  %155 = vmatprep.subr.mxu0 0.0
  %156 = vmatpush1.msra.mxu0 0.0
  %157 = vmatprep.subr.mxu0 0.0
  %158 = vmatpush1.msra.mxu0 0.0
  %159 = vmatprep.subr.mxu0 0.0
  %160 = vmatpush1.msra.mxu0 %v118
  %161 = vmatprep.subr.mxu0 0.0
  %162 = vmatpush1.msra.mxu0 %v122
  %163 = vmatprep.subr.mxu0 0.0
  %164 = vmatpush1.msra.mxu0 %v120
  %165 = vmatprep.subr.mxu0 0.0
  %166 = vmatpush2.msra.mxu0 0.0
  %167 = vmatprep.subr.mxu0 0.0
  %168 = vmatpush2.msra.mxu0 0.0
  %169 = vmatprep.subr.mxu0 0.0
  %170 = vmatpush2.msra.mxu0 0.0
  %171 = vmatprep.subr.mxu0 0.0
  %172 = vmatpush2.msra.mxu0 0.0
  %173 = vmatprep.subr.mxu0 0.0
  %174 = vmatpush2.msra.mxu0 0.0
  %175 = vmatprep.subr.mxu0 0.0
  %176 = vmatpush2.msra.mxu0 0.0
  %177 = vmatprep.subr.mxu0 0.0
  %178 = vmatpush2.msra.mxu0 0.0
  %179 = vmatprep.subr.mxu0 0.0
  %180 = vmatpush2.msra.mxu0 0.0
  %181 = vmatprep.subr.mxu0 0.0
  %182 = vmatpush2.msra.mxu0 0.0
  %183 = vmatprep.subr.mxu0 0.0
  %184 = vmatpush2.msra.mxu0 0.0
  %185 = vmatprep.subr.mxu0 0.0
  %186 = vmatpush2.msra.mxu0 0.0
  %187 = vmatprep.subr.mxu0 0.0
  %188 = vmatpush2.msra.mxu0 0.0
  %189 = vmatprep.subr.mxu0 0.0
  %190 = vmatpush2.msra.mxu0 0.0
  %191 = vmatprep.subr.mxu0 0.0
  %192 = vmatpush2.msra.mxu0 0.0
  %193 = vmatprep.subr.mxu0 0.0
  %194 = vmatpush2.msra.mxu0 0.0
  %195 = vmatprep.subr.mxu0 0.0
  %196 = vmatpush2.msra.mxu0 0.0
  %197 = vmatprep.mubr.f32.mxu0 0.0
  %198 = vmatmul.mubr.f32.gmra.mxu0 %v131
  %v199 = vpop.f32.mrf.mxu0
  %v200 = vadd.f32 %v128, %v199
  %v201 = vpop.f32.mrf.mxu0
  %202 = vdwg.mxu0
  %vm203 = vcmp.gt.f32.partialorder %v200, 0.0
  %v204 = vmul.f32 %v200, 0.01
  %v205 = vsel %vm203, %v200, %v204
  %v206 = vld [vmem:[%s1 + $0x10] sm:$0xff]
  %v207 = vld [vmem:[%s2 + $0x10] sm:$0xff]
  %209 = vset.pattern.permute.xlu0 0
  %210 = vperm.xlu0 %209, %v207
  %v211 = vpop.permute.xlu0 %210
  %vm213 = vcmask 64512
  %v215 = vsel %vm213, %v206, 0
  %217 = vmatprep.subr.mxu0 0.0
  %218 = vmatpush1.msra.mxu0 0.0
  %219 = vmatprep.subr.mxu0 0.0
  %220 = vmatpush1.msra.mxu0 0.0
  %221 = vmatprep.subr.mxu0 0.0
  %222 = vmatpush1.msra.mxu0 0.0
  %223 = vmatprep.subr.mxu0 0.0
  %224 = vmatpush1.msra.mxu0 0.0
  %225 = vmatprep.subr.mxu0 0.0
  %226 = vmatpush1.msra.mxu0 0.0
  %227 = vmatprep.subr.mxu0 0.0
  %228 = vmatpush1.msra.mxu0 0.0
  %229 = vmatprep.subr.mxu0 0.0
  %230 = vmatpush1.msra.mxu0 0.0
  %231 = vmatprep.subr.mxu0 0.0
  %232 = vmatpush1.msra.mxu0 0.0
  %233 = vmatprep.subr.mxu0 0.0
  %234 = vmatpush1.msra.mxu0 0.0
  %235 = vmatprep.subr.mxu0 0.0
  %236 = vmatpush1.msra.mxu0 0.0
  %237 = vmatprep.subr.mxu0 0.0
  %238 = vmatpush1.msra.mxu0 0.0
  %239 = vmatprep.subr.mxu0 0.0
  %240 = vmatpush1.msra.mxu0 0.0
  %241 = vmatprep.subr.mxu0 0.0
  %242 = vmatpush1.msra.mxu0 0.0
  %243 = vmatprep.subr.mxu0 0.0
  %244 = vmatpush1.msra.mxu0 0.0
  %245 = vmatprep.subr.mxu0 0.0
  %246 = vmatpush1.msra.mxu0 0.0
  %247 = vmatprep.subr.mxu0 0.0
  %248 = vmatpush1.msra.mxu0 %v29
  %249 = vmatprep.subr.mxu0 0.0
  %250 = vmatpush2.msra.mxu0 0.0
  %251 = vmatprep.subr.mxu0 0.0
  %252 = vmatpush2.msra.mxu0 0.0
  %253 = vmatprep.subr.mxu0 0.0
  %254 = vmatpush2.msra.mxu0 0.0
  %255 = vmatprep.subr.mxu0 0.0
  %256 = vmatpush2.msra.mxu0 0.0
  %257 = vmatprep.subr.mxu0 0.0
  %258 = vmatpush2.msra.mxu0 0.0
  %259 = vmatprep.subr.mxu0 0.0
  %260 = vmatpush2.msra.mxu0 0.0
  %261 = vmatprep.subr.mxu0 0.0
  %262 = vmatpush2.msra.mxu0 0.0
  %263 = vmatprep.subr.mxu0 0.0
  %264 = vmatpush2.msra.mxu0 0.0
  %265 = vmatprep.subr.mxu0 0.0
  %266 = vmatpush2.msra.mxu0 0.0
  %267 = vmatprep.subr.mxu0 0.0
  %268 = vmatpush2.msra.mxu0 0.0
  %269 = vmatprep.subr.mxu0 0.0
  %270 = vmatpush2.msra.mxu0 0.0
  %271 = vmatprep.subr.mxu0 0.0
  %272 = vmatpush2.msra.mxu0 0.0
  %273 = vmatprep.subr.mxu0 0.0
  %274 = vmatpush2.msra.mxu0 0.0
  %275 = vmatprep.subr.mxu0 0.0
  %276 = vmatpush2.msra.mxu0 0.0
  %277 = vmatprep.subr.mxu0 0.0
  %278 = vmatpush2.msra.mxu0 0.0
  %279 = vmatprep.subr.mxu0 0.0
  %280 = vmatpush2.msra.mxu0 0.0
  %281 = vmatprep.mubr.f32.mxu0 0.0
  %282 = vmatmul.mubr.f32.gmra.mxu0 %v215
  %v283 = vpop.f32.mrf.mxu0
  %v284 = vadd.f32 %v211, %v283
  %v285 = vpop.f32.mrf.mxu0
  %286 = vdwg.mxu0
  %v287 = vadd.f32 %v205, %v284
  %v288 = vmul.f32 %v287, %v27
  %289 = vrot.lane.b32.xlu0 %v288, 4
  %v290 = vpop.permute.xlu0 %289
  %291 = vrot.lane.b32.xlu0 %v288, 2
  %v292 = vpop.permute.xlu0 %291
  %v293 = vld [vmem:[%s1 + $0x18] sm:$0xff]
  %v294 = vld [vmem:[%s2 + $0x18] sm:$0xff]
  %296 = vset.pattern.permute.xlu0 0
  %297 = vperm.xlu0 %296, %v294
  %v298 = vpop.permute.xlu0 %297
  %v301 = vsel %vm41, %v293, 0
  %303 = vmatprep.subr.mxu0 0.0
  %304 = vmatpush1.msra.mxu0 0.0
  %305 = vmatprep.subr.mxu0 0.0
  %306 = vmatpush1.msra.mxu0 0.0
  %307 = vmatprep.subr.mxu0 0.0
  %308 = vmatpush1.msra.mxu0 0.0
  %309 = vmatprep.subr.mxu0 0.0
  %310 = vmatpush1.msra.mxu0 0.0
  %311 = vmatprep.subr.mxu0 0.0
  %312 = vmatpush1.msra.mxu0 0.0
  %313 = vmatprep.subr.mxu0 0.0
  %314 = vmatpush1.msra.mxu0 0.0
  %315 = vmatprep.subr.mxu0 0.0
  %316 = vmatpush1.msra.mxu0 0.0
  %317 = vmatprep.subr.mxu0 0.0
  %318 = vmatpush1.msra.mxu0 0.0
  %319 = vmatprep.subr.mxu0 0.0
  %320 = vmatpush1.msra.mxu0 0.0
  %321 = vmatprep.subr.mxu0 0.0
  %322 = vmatpush1.msra.mxu0 0.0
  %323 = vmatprep.subr.mxu0 0.0
  %324 = vmatpush1.msra.mxu0 0.0
  %325 = vmatprep.subr.mxu0 0.0
  %326 = vmatpush1.msra.mxu0 0.0
  %327 = vmatprep.subr.mxu0 0.0
  %328 = vmatpush1.msra.mxu0 0.0
  %329 = vmatprep.subr.mxu0 0.0
  %330 = vmatpush1.msra.mxu0 %v288
  %331 = vmatprep.subr.mxu0 0.0
  %332 = vmatpush1.msra.mxu0 %v292
  %333 = vmatprep.subr.mxu0 0.0
  %334 = vmatpush1.msra.mxu0 %v290
  %335 = vmatprep.subr.mxu0 0.0
  %336 = vmatpush2.msra.mxu0 0.0
  %337 = vmatprep.subr.mxu0 0.0
  %338 = vmatpush2.msra.mxu0 0.0
  %339 = vmatprep.subr.mxu0 0.0
  %340 = vmatpush2.msra.mxu0 0.0
  %341 = vmatprep.subr.mxu0 0.0
  %342 = vmatpush2.msra.mxu0 0.0
  %343 = vmatprep.subr.mxu0 0.0
  %344 = vmatpush2.msra.mxu0 0.0
  %345 = vmatprep.subr.mxu0 0.0
  %346 = vmatpush2.msra.mxu0 0.0
  %347 = vmatprep.subr.mxu0 0.0
  %348 = vmatpush2.msra.mxu0 0.0
  %349 = vmatprep.subr.mxu0 0.0
  %350 = vmatpush2.msra.mxu0 0.0
  %351 = vmatprep.subr.mxu0 0.0
  %352 = vmatpush2.msra.mxu0 0.0
  %353 = vmatprep.subr.mxu0 0.0
  %354 = vmatpush2.msra.mxu0 0.0
  %355 = vmatprep.subr.mxu0 0.0
  %356 = vmatpush2.msra.mxu0 0.0
  %357 = vmatprep.subr.mxu0 0.0
  %358 = vmatpush2.msra.mxu0 0.0
  %359 = vmatprep.subr.mxu0 0.0
  %360 = vmatpush2.msra.mxu0 0.0
  %361 = vmatprep.subr.mxu0 0.0
  %362 = vmatpush2.msra.mxu0 0.0
  %363 = vmatprep.subr.mxu0 0.0
  %364 = vmatpush2.msra.mxu0 0.0
  %365 = vmatprep.subr.mxu0 0.0
  %366 = vmatpush2.msra.mxu0 0.0
  %367 = vmatprep.mubr.f32.mxu0 0.0
  %368 = vmatmul.mubr.f32.gmra.mxu0 %v301
  %v369 = vpop.f32.mrf.mxu0
  %v370 = vadd.f32 %v298, %v369
  %v371 = vpop.f32.mrf.mxu0
  %372 = vdwg.mxu0
  %vm373 = vcmp.gt.f32.partialorder %v370, 0.0
  %v374 = vmul.f32 %v370, 0.01
  %v375 = vsel %vm373, %v370, %v374
  %v376 = vmul.f32 %v375, %v27
  %377 = vrot.lane.b32.xlu0 %v376, 4
  %v378 = vpop.permute.xlu0 %377
  %379 = vrot.lane.b32.xlu0 %v376, 2
  %v380 = vpop.permute.xlu0 %379
  %v381 = vld [vmem:[%s1 + $0x20] sm:$0xff]
  %v382 = vld [vmem:[%s2 + $0x20] sm:$0xff]
  %384 = vset.pattern.permute.xlu0 0
  %385 = vperm.xlu0 %384, %v382
  %v386 = vpop.permute.xlu0 %385
  %v389 = vsel %vm41, %v381, 0
  %391 = vmatprep.subr.mxu0 0.0
  %392 = vmatpush1.msra.mxu0 0.0
  %393 = vmatprep.subr.mxu0 0.0
  %394 = vmatpush1.msra.mxu0 0.0
  %395 = vmatprep.subr.mxu0 0.0
  %396 = vmatpush1.msra.mxu0 0.0
  %397 = vmatprep.subr.mxu0 0.0
  %398 = vmatpush1.msra.mxu0 0.0
  %399 = vmatprep.subr.mxu0 0.0
  %400 = vmatpush1.msra.mxu0 0.0
  %401 = vmatprep.subr.mxu0 0.0
  %402 = vmatpush1.msra.mxu0 0.0
  %403 = vmatprep.subr.mxu0 0.0
  %404 = vmatpush1.msra.mxu0 0.0
  %405 = vmatprep.subr.mxu0 0.0
  %406 = vmatpush1.msra.mxu0 0.0
  %407 = vmatprep.subr.mxu0 0.0
  %408 = vmatpush1.msra.mxu0 0.0
  %409 = vmatprep.subr.mxu0 0.0
  %410 = vmatpush1.msra.mxu0 0.0
  %411 = vmatprep.subr.mxu0 0.0
  %412 = vmatpush1.msra.mxu0 0.0
  %413 = vmatprep.subr.mxu0 0.0
  %414 = vmatpush1.msra.mxu0 0.0
  %415 = vmatprep.subr.mxu0 0.0
  %416 = vmatpush1.msra.mxu0 0.0
  %417 = vmatprep.subr.mxu0 0.0
  %418 = vmatpush1.msra.mxu0 %v376
  %419 = vmatprep.subr.mxu0 0.0
  %420 = vmatpush1.msra.mxu0 %v380
  %421 = vmatprep.subr.mxu0 0.0
  %422 = vmatpush1.msra.mxu0 %v378
  %423 = vmatprep.subr.mxu0 0.0
  %424 = vmatpush2.msra.mxu0 0.0
  %425 = vmatprep.subr.mxu0 0.0
  %426 = vmatpush2.msra.mxu0 0.0
  %427 = vmatprep.subr.mxu0 0.0
  %428 = vmatpush2.msra.mxu0 0.0
  %429 = vmatprep.subr.mxu0 0.0
  %430 = vmatpush2.msra.mxu0 0.0
  %431 = vmatprep.subr.mxu0 0.0
  %432 = vmatpush2.msra.mxu0 0.0
  %433 = vmatprep.subr.mxu0 0.0
  %434 = vmatpush2.msra.mxu0 0.0
  %435 = vmatprep.subr.mxu0 0.0
  %436 = vmatpush2.msra.mxu0 0.0
  %437 = vmatprep.subr.mxu0 0.0
  %438 = vmatpush2.msra.mxu0 0.0
  %439 = vmatprep.subr.mxu0 0.0
  %440 = vmatpush2.msra.mxu0 0.0
  %441 = vmatprep.subr.mxu0 0.0
  %442 = vmatpush2.msra.mxu0 0.0
  %443 = vmatprep.subr.mxu0 0.0
  %444 = vmatpush2.msra.mxu0 0.0
  %445 = vmatprep.subr.mxu0 0.0
  %446 = vmatpush2.msra.mxu0 0.0
  %447 = vmatprep.subr.mxu0 0.0
  %448 = vmatpush2.msra.mxu0 0.0
  %449 = vmatprep.subr.mxu0 0.0
  %450 = vmatpush2.msra.mxu0 0.0
  %451 = vmatprep.subr.mxu0 0.0
  %452 = vmatpush2.msra.mxu0 0.0
  %453 = vmatprep.subr.mxu0 0.0
  %454 = vmatpush2.msra.mxu0 0.0
  %455 = vmatprep.mubr.f32.mxu0 0.0
  %456 = vmatmul.mubr.f32.gmra.mxu0 %v389
  %v457 = vpop.f32.mrf.mxu0
  %v458 = vadd.f32 %v386, %v457
  %v459 = vpop.f32.mrf.mxu0
  %460 = vdwg.mxu0
  %vm461 = vcmp.gt.f32.partialorder %v458, 0.0
  %v462 = vmul.f32 %v458, 0.01
  %v463 = vsel %vm461, %v458, %v462
  %v464 = vadd.f32 %v463, %v287
  %v465 = vmul.f32 %v464, %v27
  %466 = vrot.lane.b32.xlu0 %v465, 8
  %v467 = vpop.permute.xlu0 %466
  %468 = vrot.lane.b32.xlu0 %v465, 4
  %v469 = vpop.permute.xlu0 %468
  %v470 = vld [vmem:[%s1 + $0x28] sm:$0xff]
  %v471 = vld [vmem:[%s1 + $0x30] sm:$0xff]
  %v472 = vld [vmem:[%s2 + $0x28] sm:$0xff]
  %v473 = vld [vmem:[%s2 + $0x30] sm:$0xff]
  %475 = vset.pattern.permute.xlu0 0
  %476 = vperm.xlu0 %475, %v472
  %v477 = vpop.permute.xlu0 %476
  %480 = vset.pattern.permute.xlu0 0
  %481 = vperm.xlu0 %480, %v473
  %v482 = vpop.permute.xlu0 %481
  %v485 = vsel %vm41, %v470, 0
  %v488 = vsel %vm41, %v471, 0
  %490 = vmatprep.subr.mxu0 0.0
  %491 = vmatpush1.msra.mxu0 0.0
  %492 = vmatprep.subr.mxu0 0.0
  %493 = vmatpush1.msra.mxu0 0.0
  %494 = vmatprep.subr.mxu0 0.0
  %495 = vmatpush1.msra.mxu0 0.0
  %496 = vmatprep.subr.mxu0 0.0
  %497 = vmatpush1.msra.mxu0 0.0
  %498 = vmatprep.subr.mxu0 0.0
  %499 = vmatpush1.msra.mxu0 0.0
  %500 = vmatprep.subr.mxu0 0.0
  %501 = vmatpush1.msra.mxu0 0.0
  %502 = vmatprep.subr.mxu0 0.0
  %503 = vmatpush1.msra.mxu0 0.0
  %504 = vmatprep.subr.mxu0 0.0
  %505 = vmatpush1.msra.mxu0 0.0
  %506 = vmatprep.subr.mxu0 0.0
  %507 = vmatpush1.msra.mxu0 0.0
  %508 = vmatprep.subr.mxu0 0.0
  %509 = vmatpush1.msra.mxu0 0.0
  %510 = vmatprep.subr.mxu0 0.0
  %511 = vmatpush1.msra.mxu0 0.0
  %512 = vmatprep.subr.mxu0 0.0
  %513 = vmatpush1.msra.mxu0 0.0
  %514 = vmatprep.subr.mxu0 0.0
  %515 = vmatpush1.msra.mxu0 0.0
  %516 = vmatprep.subr.mxu0 0.0
  %517 = vmatpush1.msra.mxu0 %v465
  %518 = vmatprep.subr.mxu0 0.0
  %519 = vmatpush1.msra.mxu0 %v469
  %520 = vmatprep.subr.mxu0 0.0
  %521 = vmatpush1.msra.mxu0 %v467
  %522 = vmatprep.subr.mxu0 0.0
  %523 = vmatpush2.msra.mxu0 0.0
  %524 = vmatprep.subr.mxu0 0.0
  %525 = vmatpush2.msra.mxu0 0.0
  %526 = vmatprep.subr.mxu0 0.0
  %527 = vmatpush2.msra.mxu0 0.0
  %528 = vmatprep.subr.mxu0 0.0
  %529 = vmatpush2.msra.mxu0 0.0
  %530 = vmatprep.subr.mxu0 0.0
  %531 = vmatpush2.msra.mxu0 0.0
  %532 = vmatprep.subr.mxu0 0.0
  %533 = vmatpush2.msra.mxu0 0.0
  %534 = vmatprep.subr.mxu0 0.0
  %535 = vmatpush2.msra.mxu0 0.0
  %536 = vmatprep.subr.mxu0 0.0
  %537 = vmatpush2.msra.mxu0 0.0
  %538 = vmatprep.subr.mxu0 0.0
  %539 = vmatpush2.msra.mxu0 0.0
  %540 = vmatprep.subr.mxu0 0.0
  %541 = vmatpush2.msra.mxu0 0.0
  %542 = vmatprep.subr.mxu0 0.0
  %543 = vmatpush2.msra.mxu0 0.0
  %544 = vmatprep.subr.mxu0 0.0
  %545 = vmatpush2.msra.mxu0 0.0
  %546 = vmatprep.subr.mxu0 0.0
  %547 = vmatpush2.msra.mxu0 0.0
  %548 = vmatprep.subr.mxu0 0.0
  %549 = vmatpush2.msra.mxu0 0.0
  %550 = vmatprep.subr.mxu0 0.0
  %551 = vmatpush2.msra.mxu0 0.0
  %552 = vmatprep.subr.mxu0 0.0
  %553 = vmatpush2.msra.mxu0 0.0
  %554 = vmatprep.mubr.f32.mxu0 0.0
  %555 = vmatmul.mubr.f32.gmra.mxu0 %v485
  %v556 = vpop.f32.mrf.mxu0
  %v557 = vadd.f32 %v477, %v556
  %v558 = vpop.f32.mrf.mxu0
  %559 = vmatprep.mubr.f32.mxu0 0.0
  %560 = vmatmul.mubr.f32.gmra.mxu0 %v488
  %v561 = vpop.f32.mrf.mxu0
  %v562 = vadd.f32 %v482, %v561
  %v563 = vpop.f32.mrf.mxu0
  %564 = vdwg.mxu0
  %vm565 = vcmp.gt.f32.partialorder %v557, 0.0
  %vm566 = vcmp.gt.f32.partialorder %v562, 0.0
  %v567 = vmul.f32 %v557, 0.01
  %v568 = vmul.f32 %v562, 0.01
  %v569 = vsel %vm565, %v557, %v567
  %v570 = vsel %vm566, %v562, %v568
  %v571 = vmul.f32 %v569, %v27
  %v572 = vmul.f32 %v570, %v27
  %573 = vrot.lane.b32.xlu0 %v571, 8
  %v574 = vpop.permute.xlu0 %573
  %575 = vrot.lane.b32.xlu0 %v572, 8
  %v576 = vpop.permute.xlu0 %575
  %577 = vrot.lane.b32.xlu0 %v571, 4
  %v578 = vpop.permute.xlu0 %577
  %579 = vrot.lane.b32.xlu0 %v572, 4
  %v580 = vpop.permute.xlu0 %579
  %v581 = vld [vmem:[%s1 + $0x38] sm:$0xff]
  %v582 = vld [vmem:[%s1 + $0x40] sm:$0xff]
  %v583 = vld [vmem:[%s2 + $0x38] sm:$0xff]
  %v584 = vld [vmem:[%s2 + $0x40] sm:$0xff]
  %586 = vset.pattern.permute.xlu0 0
  %587 = vperm.xlu0 %586, %v583
  %v588 = vpop.permute.xlu0 %587
  %591 = vset.pattern.permute.xlu0 0
  %592 = vperm.xlu0 %591, %v584
  %v593 = vpop.permute.xlu0 %592
  %vm595 = vcmask 392192
  %v597 = vsel %vm595, %v581, 0
  %v600 = vsel %vm595, %v582, 0
  %602 = vmatprep.subr.mxu0 0.0
  %603 = vmatpush1.msra.mxu0 0.0
  %604 = vmatprep.subr.mxu0 0.0
  %605 = vmatpush1.msra.mxu0 0.0
  %606 = vmatprep.subr.mxu0 0.0
  %607 = vmatpush1.msra.mxu0 0.0
  %608 = vmatprep.subr.mxu0 0.0
  %609 = vmatpush1.msra.mxu0 0.0
  %610 = vmatprep.subr.mxu0 0.0
  %611 = vmatpush1.msra.mxu0 0.0
  %612 = vmatprep.subr.mxu0 0.0
  %613 = vmatpush1.msra.mxu0 0.0
  %614 = vmatprep.subr.mxu0 0.0
  %615 = vmatpush1.msra.mxu0 0.0
  %616 = vmatprep.subr.mxu0 0.0
  %617 = vmatpush1.msra.mxu0 0.0
  %618 = vmatprep.subr.mxu0 0.0
  %619 = vmatpush1.msra.mxu0 0.0
  %620 = vmatprep.subr.mxu0 0.0
  %621 = vmatpush1.msra.mxu0 0.0
  %622 = vmatprep.subr.mxu0 0.0
  %623 = vmatpush1.msra.mxu0 %v572
  %624 = vmatprep.subr.mxu0 0.0
  %625 = vmatpush1.msra.mxu0 %v571
  %626 = vmatprep.subr.mxu0 0.0
  %627 = vmatpush1.msra.mxu0 %v580
  %628 = vmatprep.subr.mxu0 0.0
  %629 = vmatpush1.msra.mxu0 %v578
  %630 = vmatprep.subr.mxu0 0.0
  %631 = vmatpush1.msra.mxu0 %v576
  %632 = vmatprep.subr.mxu0 0.0
  %633 = vmatpush1.msra.mxu0 %v574
  %634 = vmatprep.subr.mxu0 0.0
  %635 = vmatpush2.msra.mxu0 0.0
  %636 = vmatprep.subr.mxu0 0.0
  %637 = vmatpush2.msra.mxu0 0.0
  %638 = vmatprep.subr.mxu0 0.0
  %639 = vmatpush2.msra.mxu0 0.0
  %640 = vmatprep.subr.mxu0 0.0
  %641 = vmatpush2.msra.mxu0 0.0
  %642 = vmatprep.subr.mxu0 0.0
  %643 = vmatpush2.msra.mxu0 0.0
  %644 = vmatprep.subr.mxu0 0.0
  %645 = vmatpush2.msra.mxu0 0.0
  %646 = vmatprep.subr.mxu0 0.0
  %647 = vmatpush2.msra.mxu0 0.0
  %648 = vmatprep.subr.mxu0 0.0
  %649 = vmatpush2.msra.mxu0 0.0
  %650 = vmatprep.subr.mxu0 0.0
  %651 = vmatpush2.msra.mxu0 0.0
  %652 = vmatprep.subr.mxu0 0.0
  %653 = vmatpush2.msra.mxu0 0.0
  %654 = vmatprep.subr.mxu0 0.0
  %655 = vmatpush2.msra.mxu0 0.0
  %656 = vmatprep.subr.mxu0 0.0
  %657 = vmatpush2.msra.mxu0 0.0
  %658 = vmatprep.subr.mxu0 0.0
  %659 = vmatpush2.msra.mxu0 0.0
  %660 = vmatprep.subr.mxu0 0.0
  %661 = vmatpush2.msra.mxu0 0.0
  %662 = vmatprep.subr.mxu0 0.0
  %663 = vmatpush2.msra.mxu0 0.0
  %664 = vmatprep.subr.mxu0 0.0
  %665 = vmatpush2.msra.mxu0 0.0
  %666 = vmatprep.mubr.f32.mxu0 0.0
  %667 = vmatmul.mubr.f32.gmra.mxu0 %v597
  %v668 = vpop.f32.mrf.mxu0
  %v669 = vadd.f32 %v588, %v668
  %v670 = vpop.f32.mrf.mxu0
  %671 = vmatprep.mubr.f32.mxu0 0.0
  %672 = vmatmul.mubr.f32.gmra.mxu0 %v600
  %v673 = vpop.f32.mrf.mxu0
  %v674 = vadd.f32 %v593, %v673
  %v675 = vpop.f32.mrf.mxu0
  %676 = vdwg.mxu0
  %vm677 = vcmp.gt.f32.partialorder %v669, 0.0
  %vm678 = vcmp.gt.f32.partialorder %v674, 0.0
  %v679 = vmul.f32 %v669, 0.01
  %v680 = vmul.f32 %v674, 0.01
  %v681 = vsel %vm677, %v669, %v679
  %v682 = vsel %vm678, %v674, %v680
  %v683 = vld [vmem:[%s1 + $0x48] sm:$0xff]
  %v684 = vld [vmem:[%s1 + $0x50] sm:$0xff]
  %v685 = vld [vmem:[%s2 + $0x48] sm:$0xff]
  %v686 = vld [vmem:[%s2 + $0x50] sm:$0xff]
  %688 = vset.pattern.permute.xlu0 0
  %689 = vperm.xlu0 %688, %v685
  %v690 = vpop.permute.xlu0 %689
  %693 = vset.pattern.permute.xlu0 0
  %694 = vperm.xlu0 %693, %v686
  %v695 = vpop.permute.xlu0 %694
  %v698 = vsel %vm213, %v683, 0
  %v701 = vsel %vm213, %v684, 0
  %703 = vmatprep.subr.mxu0 0.0
  %704 = vmatpush1.msra.mxu0 0.0
  %705 = vmatprep.subr.mxu0 0.0
  %706 = vmatpush1.msra.mxu0 0.0
  %707 = vmatprep.subr.mxu0 0.0
  %708 = vmatpush1.msra.mxu0 0.0
  %709 = vmatprep.subr.mxu0 0.0
  %710 = vmatpush1.msra.mxu0 0.0
  %711 = vmatprep.subr.mxu0 0.0
  %712 = vmatpush1.msra.mxu0 0.0
  %713 = vmatprep.subr.mxu0 0.0
  %714 = vmatpush1.msra.mxu0 0.0
  %715 = vmatprep.subr.mxu0 0.0
  %716 = vmatpush1.msra.mxu0 0.0
  %717 = vmatprep.subr.mxu0 0.0
  %718 = vmatpush1.msra.mxu0 0.0
  %719 = vmatprep.subr.mxu0 0.0
  %720 = vmatpush1.msra.mxu0 0.0
  %721 = vmatprep.subr.mxu0 0.0
  %722 = vmatpush1.msra.mxu0 0.0
  %723 = vmatprep.subr.mxu0 0.0
  %724 = vmatpush1.msra.mxu0 0.0
  %725 = vmatprep.subr.mxu0 0.0
  %726 = vmatpush1.msra.mxu0 0.0
  %727 = vmatprep.subr.mxu0 0.0
  %728 = vmatpush1.msra.mxu0 0.0
  %729 = vmatprep.subr.mxu0 0.0
  %730 = vmatpush1.msra.mxu0 0.0
  %731 = vmatprep.subr.mxu0 0.0
  %732 = vmatpush1.msra.mxu0 0.0
  %733 = vmatprep.subr.mxu0 0.0
  %734 = vmatpush1.msra.mxu0 %v465
  %735 = vmatprep.subr.mxu0 0.0
  %736 = vmatpush2.msra.mxu0 0.0
  %737 = vmatprep.subr.mxu0 0.0
  %738 = vmatpush2.msra.mxu0 0.0
  %739 = vmatprep.subr.mxu0 0.0
  %740 = vmatpush2.msra.mxu0 0.0
  %741 = vmatprep.subr.mxu0 0.0
  %742 = vmatpush2.msra.mxu0 0.0
  %743 = vmatprep.subr.mxu0 0.0
  %744 = vmatpush2.msra.mxu0 0.0
  %745 = vmatprep.subr.mxu0 0.0
  %746 = vmatpush2.msra.mxu0 0.0
  %747 = vmatprep.subr.mxu0 0.0
  %748 = vmatpush2.msra.mxu0 0.0
  %749 = vmatprep.subr.mxu0 0.0
  %750 = vmatpush2.msra.mxu0 0.0
  %751 = vmatprep.subr.mxu0 0.0
  %752 = vmatpush2.msra.mxu0 0.0
  %753 = vmatprep.subr.mxu0 0.0
  %754 = vmatpush2.msra.mxu0 0.0
  %755 = vmatprep.subr.mxu0 0.0
  %756 = vmatpush2.msra.mxu0 0.0
  %757 = vmatprep.subr.mxu0 0.0
  %758 = vmatpush2.msra.mxu0 0.0
  %759 = vmatprep.subr.mxu0 0.0
  %760 = vmatpush2.msra.mxu0 0.0
  %761 = vmatprep.subr.mxu0 0.0
  %762 = vmatpush2.msra.mxu0 0.0
  %763 = vmatprep.subr.mxu0 0.0
  %764 = vmatpush2.msra.mxu0 0.0
  %765 = vmatprep.subr.mxu0 0.0
  %766 = vmatpush2.msra.mxu0 0.0
  %767 = vmatprep.mubr.f32.mxu0 0.0
  %768 = vmatmul.mubr.f32.gmra.mxu0 %v698
  %v769 = vpop.f32.mrf.mxu0
  %v770 = vadd.f32 %v690, %v769
  %v771 = vpop.f32.mrf.mxu0
  %772 = vmatprep.mubr.f32.mxu0 0.0
  %773 = vmatmul.mubr.f32.gmra.mxu0 %v701
  %v774 = vpop.f32.mrf.mxu0
  %v775 = vadd.f32 %v695, %v774
  %v776 = vpop.f32.mrf.mxu0
  %777 = vdwg.mxu0
  %v778 = vadd.f32 %v681, %v770
  %v779 = vadd.f32 %v682, %v775
  %780 = vst [vmem:[%s3] sm:$0xff] %v778
  %781 = vst [vmem:[%s3 + $0x8] sm:$0xff] %v779
  // Predicated region
  $region14: #{forward.1} parent=0 // pred_check
    _
  $region15: #{forward.1} parent=0 // pred_check_branch
    %783 = sbr.rel (0) target = $region17
  $region16: #{forward.1} parent=0 // pred_region
    _
  $region17: #{forward.1} parent=0 // pred_fallthru
    _
  // Predicated region
  $region18: #{forward.1} parent=0 // pred_check
    _
  $region19: #{forward.1} parent=0 // pred_check_branch
    %785 = sbr.rel (0) target = $region21
  $region20: #{forward.1} parent=0 // pred_region
    _
  $region21: #{forward.1} parent=0 // pred_fallthru
    _

</llo_original>
